<compile_context>
chip_gen: v6e
topology: v6e:2x2x1
jax: 0.10.0
libtpu: 0.0.40
codegen_flags: <defaults>
</compile_context>

<pallas_src>
import math

import jax
import jax.numpy as jnp
from jax.experimental import pallas as pl
from jax.experimental.pallas import tpu as pltpu


# ----------------------------------------------------------------------------
# Kernel: tiled (M, K) @ (K, N) + bias, f32 accumulation
# ----------------------------------------------------------------------------
def linear_kernel(x_ref, w_ref, b_ref, o_ref, acc_ref):
    # x_ref: (tm, tk)  w_ref: (tk, tn)  b_ref: (1, tn)  o_ref: (tm, tn)
    # acc_ref: VMEM (tm, tn) f32 accumulator, resident across the K axis.
    k = pl.program_id(2)

    @pl.when(k == 0)
    def _():
        acc_ref[...] = jnp.zeros_like(acc_ref)

    acc_ref[...] += jnp.dot(
        x_ref[...], w_ref[...], preferred_element_type=jnp.float32
    )

    @pl.when(k == pl.num_programs(2) - 1)
    def _():
        o_ref[...] = (acc_ref[...] + b_ref[...]).astype(o_ref.dtype)


# ----------------------------------------------------------------------------
# Wrapper: pad to MXU/lane-friendly tiles, launch one pallas_call, un-pad.
# ----------------------------------------------------------------------------
def _round_up(x, m):
    return (x + m - 1) // m * m


def net2_forward(x, weight, bias):
    """out = x @ weight.T + bias   (weight: (out_dim, in_dim), bias: (out_dim,))"""
    orig_shape = x.shape
    K = orig_shape[-1]
    N = weight.shape[0]
    x2 = x.reshape(-1, K)  # nn.Linear acts on the last dim
    M = x2.shape[0]

    # ---- tile / pad sizes (last dims multiples of 128, sublane dims of 8) ----
    Mp = _round_up(M, 8)
    if Mp > 512:
        tm = 128
        Mp = _round_up(M, tm)
    else:
        tm = Mp

    Np = _round_up(N, 128)
    tn = 256 if Np % 256 == 0 else 128

    Kp = _round_up(K, 128)
    if Kp % 512 == 0:
        tk = 512
    elif Kp % 256 == 0:
        tk = 256
    else:
        tk = 128

    # ---- zero-pad operands (zeros in K contribute nothing to the dot) ----
    xp = jnp.pad(x2.astype(jnp.float32), ((0, Mp - M), (0, Kp - K)))
    wt = jnp.pad(
        jnp.transpose(weight.astype(jnp.float32)), ((0, Kp - K), (0, Np - N))
    )  # (Kp, Np)
    bp = jnp.pad(bias.astype(jnp.float32), (0, Np - N)).reshape(1, Np)

    grid = (Mp // tm, Np // tn, Kp // tk)

    out_p = pl.pallas_call(
        linear_kernel,
        out_shape=jax.ShapeDtypeStruct((Mp, Np), jnp.float32),
        grid=grid,
        in_specs=[
            pl.BlockSpec((tm, tk), lambda i, j, k: (i, k)),
            pl.BlockSpec((tk, tn), lambda i, j, k: (k, j)),
            pl.BlockSpec((1, tn), lambda i, j, k: (0, j)),
        ],
        out_specs=pl.BlockSpec((tm, tn), lambda i, j, k: (i, j)),
        scratch_shapes=[pltpu.VMEM((tm, tn), jnp.float32)],
        compiler_params=pltpu.CompilerParams(
            dimension_semantics=("parallel", "parallel", "arbitrary")
        ),
    )(xp, wt, bp)

    out = out_p[:M, :N]
    return out.reshape(orig_shape[:-1] + (N,))


# ----------------------------------------------------------------------------
# Deterministic parameter init (mirrors nn.Linear's shapes)
# ----------------------------------------------------------------------------
def init_params(key, input_dim, output_dim):
    k1, k2 = jax.random.split(key)
    limit = 1.0 / math.sqrt(input_dim)
    weight = jax.random.uniform(
        k1, (output_dim, input_dim), jnp.float32, minval=-limit, maxval=limit
    )
    bias = jax.random.uniform(
        k2, (output_dim,), jnp.float32, minval=-limit, maxval=limit
    )
    return weight, bias


if __name__ == "__main__":
    key = jax.random.PRNGKey(0)
    kp, kx = jax.random.split(key)

    batch, input_dim, output_dim = 8, 256, 256
    weight, bias = init_params(kp, input_dim, output_dim)
    x = jax.random.normal(kx, (batch, input_dim), jnp.float32)

    out = net2_forward(x, weight, bias)
    out = jax.block_until_ready(out)

    assert out.shape == (batch, output_dim), out.shape

    # Reference check against plain JAX (same math as nn.Linear).
    ref = x @ weight.T + bias
    assert jnp.allclose(out, ref, atol=1e-4, rtol=1e-4), float(
        jnp.max(jnp.abs(out - ref))
    )

    print("KERNEL_OK")
</pallas_src>

<mosaic_0001>
module attributes {stable_mosaic.version = 11 : i64} {
  func.func @linear_kernel(%arg0: i32, %arg1: i32, %arg2: i32, %arg3: memref<8x256xf32, #tpu.memory_space<vmem>>, %arg4: memref<256x256xf32, #tpu.memory_space<vmem>>, %arg5: memref<1x256xf32, #tpu.memory_space<vmem>>, %arg6: memref<8x256xf32, #tpu.memory_space<vmem>>, %arg7: memref<8x256xf32, #tpu.memory_space<vmem>>) attributes {dimension_semantics = [#tpu.dimension_semantics<parallel>, #tpu.dimension_semantics<parallel>, #tpu.dimension_semantics<arbitrary>], iteration_bounds = array<i64: 1, 1, 1>, scalar_prefetch = 0 : i64, scratch_operands = 1 : i64, tpu.core_type = #tpu.core_type<tc>, window_params = [{transform_indices = @transform_0, window_bounds = array<i64: 8, 256>}, {transform_indices = @transform_1, window_bounds = array<i64: 256, 256>}, {transform_indices = @transform_2, window_bounds = array<i64: 1, 256>}, {transform_indices = @transform_3, window_bounds = array<i64: 8, 256>}]} {
    %c0_i32 = arith.constant 0 : i32
    %0 = arith.cmpi eq, %arg2, %c0_i32 : i32
    %1 = arith.extui %0 : i1 to i32
    %c0_i32_0 = arith.constant 0 : i32
    %2 = arith.cmpi ne, %1, %c0_i32_0 : i32
    scf.if %2 {
      %cst_10 = arith.constant 0.000000e+00 : f32
      %12 = vector.broadcast %cst_10 : f32 to vector<8x256xf32>
      %c0_11 = arith.constant 0 : index
      %c0_12 = arith.constant 0 : index
      %13 = vector.load %arg7[%c0_11, %c0_12] : memref<8x256xf32, #tpu.memory_space<vmem>>, vector<8x256xf32>
      tpu.vector_store %arg7[%c0_11, %c0_12], %12 {strides = array<i32>} : memref<8x256xf32, #tpu.memory_space<vmem>>, vector<8x256xf32>,
    } else {
    }
    %c0 = arith.constant 0 : index
    %c0_1 = arith.constant 0 : index
    %3 = vector.load %arg7[%c0, %c0_1] : memref<8x256xf32, #tpu.memory_space<vmem>>, vector<8x256xf32>
    %c0_2 = arith.constant 0 : index
    %c0_3 = arith.constant 0 : index
    %4 = vector.load %arg3[%c0_2, %c0_3] : memref<8x256xf32, #tpu.memory_space<vmem>>, vector<8x256xf32>
    %c0_4 = arith.constant 0 : index
    %c0_5 = arith.constant 0 : index
    %5 = vector.load %arg4[%c0_4, %c0_5] : memref<256x256xf32, #tpu.memory_space<vmem>>, vector<256x256xf32>
    %cst = arith.constant dense<0.000000e+00> : vector<8x256xf32>
    %6 = tpu.matmul %4, %5, %cst {dimension_numbers = #tpu.dot_dimension_numbers<[1], [0], [0], [1], [0, 0, 1, 1], [], []>} : vector<8x256xf32>, vector<256x256xf32>, vector<8x256xf32> -> vector<8x256xf32>
    %7 = arith.addf %3, %6 : vector<8x256xf32>
    %c0_6 = arith.constant 0 : index
    %c0_7 = arith.constant 0 : index
    %8 = vector.load %arg7[%c0_6, %c0_7] : memref<8x256xf32, #tpu.memory_space<vmem>>, vector<8x256xf32>
    tpu.vector_store %arg7[%c0_6, %c0_7], %7 {strides = array<i32>} : memref<8x256xf32, #tpu.memory_space<vmem>>, vector<8x256xf32>,
    %c0_i32_8 = arith.constant 0 : i32
    %9 = arith.cmpi eq, %arg2, %c0_i32_8 : i32
    %10 = arith.extui %9 : i1 to i32
    %c0_i32_9 = arith.constant 0 : i32
    %11 = arith.cmpi ne, %10, %c0_i32_9 : i32
    scf.if %11 {
      %c0_10 = arith.constant 0 : index
      %c0_11 = arith.constant 0 : index
      %12 = vector.load %arg7[%c0_10, %c0_11] : memref<8x256xf32, #tpu.memory_space<vmem>>, vector<8x256xf32>
      %c0_12 = arith.constant 0 : index
      %c0_13 = arith.constant 0 : index
      %13 = vector.load %arg5[%c0_12, %c0_13] : memref<1x256xf32, #tpu.memory_space<vmem>>, vector<1x256xf32>
      %14 = vector.broadcast %13 : vector<1x256xf32> to vector<8x256xf32>
      %15 = arith.addf %12, %14 : vector<8x256xf32>
      %c0_14 = arith.constant 0 : index
      %c0_15 = arith.constant 0 : index
      %16 = vector.load %arg6[%c0_14, %c0_15] : memref<8x256xf32, #tpu.memory_space<vmem>>, vector<8x256xf32>
      tpu.vector_store %arg6[%c0_14, %c0_15], %15 {strides = array<i32>} : memref<8x256xf32, #tpu.memory_space<vmem>>, vector<8x256xf32>,
    } else {
    }
    return
  }
  func.func @transform_0(%arg0: i32, %arg1: i32, %arg2: i32) -> (i32, i32) {
    %c0_i32 = arith.constant 0 : i32
    return %arg0, %arg2 : i32, i32
  }
  func.func @transform_1(%arg0: i32, %arg1: i32, %arg2: i32) -> (i32, i32) {
    %c0_i32 = arith.constant 0 : i32
    return %arg2, %arg1 : i32, i32
  }
  func.func @transform_2(%arg0: i32, %arg1: i32, %arg2: i32) -> (i32, i32) {
    %c0_i32 = arith.constant 0 : i32
    %c0_i32_0 = arith.constant 0 : i32
    return %c0_i32, %arg1 : i32, i32
  }
  func.func @transform_3(%arg0: i32, %arg1: i32, %arg2: i32) -> (i32, i32) {
    %c0_i32 = arith.constant 0 : i32
    return %arg0, %arg1 : i32, i32
  }
}

</mosaic_0001>

<llo_original>
// kernel: tpu_custom_call.1
$region0: #{tpu_custom_call.1}
  #allocation0 [shape = 'u32[]', space=smem, size = 0x4, offset = 0x4, fixed_abs, tag = 'smem constant byte address 0x4 - core index']
  #allocation1 [shape = 'u32[144,128]{1,0:T(1,128)}', space=vmem, size = 0x12000, scoped, tag = 'internal scratch']
  #allocation2 [shape = 'f32[8,256]{1,0:T(8,128)}', space=vmem, size = 0x2000, scoped, tag = 'scratch operand']
  %s0 = inlined_call_operand.hbm [shape: f32[8,256], index: 0, kind: input, shape index: {}]
  %s1 = inlined_call_operand.hbm [shape: f32[256,256], index: 1, kind: input, shape index: {}]
  %s2 = inlined_call_operand.vmem [shape: f32[1,256], index: 2, kind: input, shape index: {}]
  %s3 = inlined_call_operand.hbm [shape: f32[8,256], index: 3, kind: output, shape index: {}]
  %s4 = sld [smem:[#allocation0]]
  $region38: #{tpu_custom_call.1} parent=0
    _
  %s6 = ssub.s32 1, %s4
  %s7 = scalar_select 0, %s6, %s4
  $region1: #{tpu_custom_call.1} parent=0
    #allocation3 [shape = 'u8[8192]{0}', space=vmem, size = 0x2000, scoped, tag = 'input window, operand 0, single buffered']
    #allocation4 [shape = 's32[1]{0}', space=sflag, size = 0x4, scoped, tag = 'scoped memory for tpu_custom_call.1']
    #allocation5 [shape = 's32[1]{0}', space=sflag, size = 0x4, scoped, tag = 'scoped memory for tpu_custom_call.1']
    #allocation6 [shape = 'u8[262144]{0}', space=vmem, size = 0x40000, scoped, tag = 'input window, operand 1, single buffered']
    #allocation7 [shape = 's32[1]{0}', space=sflag, size = 0x4, scoped, tag = 'scoped memory for tpu_custom_call.1']
    #allocation8 [shape = 'u8[8192]{0}', space=vmem, size = 0x2000, scoped, tag = 'output window, operand 0, single buffered']
    %8 = vsyncpa [#allocation4], 0
    %9 = vsyncpa [#allocation7], 0
    %10 = vsyncpa [#allocation5], 0
    // Predicated region
    $region2: #{tpu_custom_call.1} parent=1 // pred_check
      _
    $region3: #{tpu_custom_call.1} parent=1 // pred_check_branch
      %12 = sbr.rel (0) target = $region5
    $region4: #{tpu_custom_call.1} parent=1 // pred_region
      %s14 = ssub.s32 256, 256
      %15 = vsyncadd [#allocation4], %s14
      %s17 = sshll.u32 [#allocation3], 4
      %s18 = int_to_ptr.vmem [resolvable:$true] %s17
      %20 = dma.hbm_to_vmem [thread:$0]  %s0, 256, %s18, [#allocation4]
    $region5: #{tpu_custom_call.1} parent=1 // pred_fallthru
      _
    // Predicated region
    $region6: #{tpu_custom_call.1} parent=1 // pred_check
      _
    $region7: #{tpu_custom_call.1} parent=1 // pred_check_branch
      %22 = sbr.rel (0) target = $region9
    $region8: #{tpu_custom_call.1} parent=1 // pred_region
      %s24 = ssub.s32 8192, 8192
      %25 = vsyncadd [#allocation7], %s24
      %s26 = sshll.u32 [#allocation6], 4
      %s27 = int_to_ptr.vmem [resolvable:$true] %s26
      %32 = dma.hbm_to_vmem [thread:$0]  %s1, 8192, %s27, [#allocation7], 256, 256, 16
    $region9: #{tpu_custom_call.1} parent=1 // pred_fallthru
      _
    // Predicated region
    $region10: #{tpu_custom_call.1} parent=1 // pred_check
      _
    $region11: #{tpu_custom_call.1} parent=1 // pred_check_branch
      %34 = sbr.rel (0) target = $region13
    $region12: #{tpu_custom_call.1} parent=1 // pred_region
      _
    $region13: #{tpu_custom_call.1} parent=1 // pred_fallthru
      _
    // Predicated region
    $region14: #{tpu_custom_call.1} parent=1 // pred_check
      _
    $region15: #{tpu_custom_call.1} parent=1 // pred_check_branch
      %36 = sbr.rel (0) target = $region17
    $region16: #{tpu_custom_call.1} parent=1 // pred_region
      %37 = dma.done [#allocation4], 256
    $region17: #{tpu_custom_call.1} parent=1 // pred_fallthru
      _
    // Predicated region
    $region18: #{tpu_custom_call.1} parent=1 // pred_check
      _
    $region19: #{tpu_custom_call.1} parent=1 // pred_check_branch
      %39 = sbr.rel (0) target = $region21
    $region20: #{tpu_custom_call.1} parent=1 // pred_region
      %40 = dma.done [#allocation7], 8192
    $region21: #{tpu_custom_call.1} parent=1 // pred_fallthru
      _
    %p41 = scmp.eq.s32.totalorder 0, 0
    // Predicated region
    $region22: #{tpu_custom_call.1} parent=1 // pred_check
      %p42 = pneg %p41
    $region23: #{tpu_custom_call.1} parent=1 // pred_check_branch
      %44 = sbr.rel (%p42) target = $region25
    $region24: #{tpu_custom_call.1} parent=1 // pred_region
      %45 = vst [vmem:[#allocation2] sm:$0xff] 0.0
      %46 = vst [vmem:[#allocation2 + $0x8] sm:$0xff] 0.0
    $region25: #{tpu_custom_call.1} parent=1 // pred_fallthru
      _
    %v47 = vld [vmem:[#allocation2] sm:$0xff]
    %v48 = vld [vmem:[#allocation2 + $0x8] sm:$0xff]
    %v49 = vld [vmem:[#allocation3] sm:$0xff]
    %v50 = vld [vmem:[#allocation3 + $0x8] sm:$0xff]
    %v51 = vld [vmem:[#allocation6] sm:$0xff]
    %v52 = vld [vmem:[#allocation6 + $0x8] sm:$0xff]
    %v53 = vld [vmem:[#allocation6 + $0x10] sm:$0xff]
    %v54 = vld [vmem:[#allocation6 + $0x18] sm:$0xff]
    %v55 = vld [vmem:[#allocation6 + $0x20] sm:$0xff]
    %v56 = vld [vmem:[#allocation6 + $0x28] sm:$0xff]
    %v57 = vld [vmem:[#allocation6 + $0x30] sm:$0xff]
    %v58 = vld [vmem:[#allocation6 + $0x38] sm:$0xff]
    %v59 = vld [vmem:[#allocation6 + $0x40] sm:$0xff]
    %v60 = vld [vmem:[#allocation6 + $0x48] sm:$0xff]
    %v61 = vld [vmem:[#allocation6 + $0x50] sm:$0xff]
    %v62 = vld [vmem:[#allocation6 + $0x58] sm:$0xff]
    %v63 = vld [vmem:[#allocation6 + $0x60] sm:$0xff]
    %v64 = vld [vmem:[#allocation6 + $0x68] sm:$0xff]
    %v65 = vld [vmem:[#allocation6 + $0x70] sm:$0xff]
    %v66 = vld [vmem:[#allocation6 + $0x78] sm:$0xff]
    %v67 = vld [vmem:[#allocation6 + $0x80] sm:$0xff]
    %v68 = vld [vmem:[#allocation6 + $0x88] sm:$0xff]
    %v69 = vld [vmem:[#allocation6 + $0x90] sm:$0xff]
    %v70 = vld [vmem:[#allocation6 + $0x98] sm:$0xff]
    %v71 = vld [vmem:[#allocation6 + $0xa0] sm:$0xff]
    %v72 = vld [vmem:[#allocation6 + $0xa8] sm:$0xff]
    %v73 = vld [vmem:[#allocation6 + $0xb0] sm:$0xff]
    %v74 = vld [vmem:[#allocation6 + $0xb8] sm:$0xff]
    %v75 = vld [vmem:[#allocation6 + $0xc0] sm:$0xff]
    %v76 = vld [vmem:[#allocation6 + $0xc8] sm:$0xff]
    %v77 = vld [vmem:[#allocation6 + $0xd0] sm:$0xff]
    %v78 = vld [vmem:[#allocation6 + $0xd8] sm:$0xff]
    %v79 = vld [vmem:[#allocation6 + $0xe0] sm:$0xff]
    %v80 = vld [vmem:[#allocation6 + $0xe8] sm:$0xff]
    %v81 = vld [vmem:[#allocation6 + $0xf0] sm:$0xff]
    %v82 = vld [vmem:[#allocation6 + $0xf8] sm:$0xff]
    %v83 = vld [vmem:[#allocation6 + $0x100] sm:$0xff]
    %v84 = vld [vmem:[#allocation6 + $0x108] sm:$0xff]
    %v85 = vld [vmem:[#allocation6 + $0x110] sm:$0xff]
    %v86 = vld [vmem:[#allocation6 + $0x118] sm:$0xff]
    %v87 = vld [vmem:[#allocation6 + $0x120] sm:$0xff]
    %v88 = vld [vmem:[#allocation6 + $0x128] sm:$0xff]
    %v89 = vld [vmem:[#allocation6 + $0x130] sm:$0xff]
    %v90 = vld [vmem:[#allocation6 + $0x138] sm:$0xff]
    %v91 = vld [vmem:[#allocation6 + $0x140] sm:$0xff]
    %v92 = vld [vmem:[#allocation6 + $0x148] sm:$0xff]
    %v93 = vld [vmem:[#allocation6 + $0x150] sm:$0xff]
    %v94 = vld [vmem:[#allocation6 + $0x158] sm:$0xff]
    %v95 = vld [vmem:[#allocation6 + $0x160] sm:$0xff]
    %v96 = vld [vmem:[#allocation6 + $0x168] sm:$0xff]
    %v97 = vld [vmem:[#allocation6 + $0x170] sm:$0xff]
    %v98 = vld [vmem:[#allocation6 + $0x178] sm:$0xff]
    %v99 = vld [vmem:[#allocation6 + $0x180] sm:$0xff]
    %v100 = vld [vmem:[#allocation6 + $0x188] sm:$0xff]
    %v101 = vld [vmem:[#allocation6 + $0x190] sm:$0xff]
    %v102 = vld [vmem:[#allocation6 + $0x198] sm:$0xff]
    %v103 = vld [vmem:[#allocation6 + $0x1a0] sm:$0xff]
    %v104 = vld [vmem:[#allocation6 + $0x1a8] sm:$0xff]
    %v105 = vld [vmem:[#allocation6 + $0x1b0] sm:$0xff]
    %v106 = vld [vmem:[#allocation6 + $0x1b8] sm:$0xff]
    %v107 = vld [vmem:[#allocation6 + $0x1c0] sm:$0xff]
    %v108 = vld [vmem:[#allocation6 + $0x1c8] sm:$0xff]
    %v109 = vld [vmem:[#allocation6 + $0x1d0] sm:$0xff]
    %v110 = vld [vmem:[#allocation6 + $0x1d8] sm:$0xff]
    %v111 = vld [vmem:[#allocation6 + $0x1e0] sm:$0xff]
    %v112 = vld [vmem:[#allocation6 + $0x1e8] sm:$0xff]
    %v113 = vld [vmem:[#allocation6 + $0x1f0] sm:$0xff]
    %v114 = vld [vmem:[#allocation6 + $0x1f8] sm:$0xff]
    %115 = vmatprep.subr.mxu0 %v82
    %116 = vmatpush1.msra.mxu0 %v81
    %117 = vmatprep.subr.mxu0 %v80
    %118 = vmatpush1.msra.mxu0 %v79
    %119 = vmatprep.subr.mxu0 %v78
    %120 = vmatpush1.msra.mxu0 %v77
    %121 = vmatprep.subr.mxu0 %v76
    %122 = vmatpush1.msra.mxu0 %v75
    %123 = vmatprep.subr.mxu0 %v74
    %124 = vmatpush1.msra.mxu0 %v73
    %125 = vmatprep.subr.mxu0 %v72
    %126 = vmatpush1.msra.mxu0 %v71
    %127 = vmatprep.subr.mxu0 %v70
    %128 = vmatpush1.msra.mxu0 %v69
    %129 = vmatprep.subr.mxu0 %v68
    %130 = vmatpush1.msra.mxu0 %v67
    %131 = vmatprep.subr.mxu0 %v66
    %132 = vmatpush1.msra.mxu0 %v65
    %133 = vmatprep.subr.mxu0 %v64
    %134 = vmatpush1.msra.mxu0 %v63
    %135 = vmatprep.subr.mxu0 %v62
    %136 = vmatpush1.msra.mxu0 %v61
    %137 = vmatprep.subr.mxu0 %v60
    %138 = vmatpush1.msra.mxu0 %v59
    %139 = vmatprep.subr.mxu0 %v58
    %140 = vmatpush1.msra.mxu0 %v57
    %141 = vmatprep.subr.mxu0 %v56
    %142 = vmatpush1.msra.mxu0 %v55
    %143 = vmatprep.subr.mxu0 %v54
    %144 = vmatpush1.msra.mxu0 %v53
    %145 = vmatprep.subr.mxu0 %v52
    %146 = vmatpush1.msra.mxu0 %v51
    %147 = vmatprep.subr.mxu0 %v114
    %148 = vmatpush2.msra.mxu0 %v113
    %149 = vmatprep.subr.mxu0 %v112
    %150 = vmatpush2.msra.mxu0 %v111
    %151 = vmatprep.subr.mxu0 %v110
    %152 = vmatpush2.msra.mxu0 %v109
    %153 = vmatprep.subr.mxu0 %v108
    %154 = vmatpush2.msra.mxu0 %v107
    %155 = vmatprep.subr.mxu0 %v106
    %156 = vmatpush2.msra.mxu0 %v105
    %157 = vmatprep.subr.mxu0 %v104
    %158 = vmatpush2.msra.mxu0 %v103
    %159 = vmatprep.subr.mxu0 %v102
    %160 = vmatpush2.msra.mxu0 %v101
    %161 = vmatprep.subr.mxu0 %v100
    %162 = vmatpush2.msra.mxu0 %v99
    %163 = vmatprep.subr.mxu0 %v98
    %164 = vmatpush2.msra.mxu0 %v97
    %165 = vmatprep.subr.mxu0 %v96
    %166 = vmatpush2.msra.mxu0 %v95
    %167 = vmatprep.subr.mxu0 %v94
    %168 = vmatpush2.msra.mxu0 %v93
    %169 = vmatprep.subr.mxu0 %v92
    %170 = vmatpush2.msra.mxu0 %v91
    %171 = vmatprep.subr.mxu0 %v90
    %172 = vmatpush2.msra.mxu0 %v89
    %173 = vmatprep.subr.mxu0 %v88
    %174 = vmatpush2.msra.mxu0 %v87
    %175 = vmatprep.subr.mxu0 %v86
    %176 = vmatpush2.msra.mxu0 %v85
    %177 = vmatprep.subr.mxu0 %v84
    %178 = vmatpush2.msra.mxu0 %v83
    %179 = vmatprep.mubr.f32.mxu0 %v50
    %180 = vmatmul.mubr.f32.gmra.mxu0 %v49
    %v181 = vpop.f32.mrf.mxu0
    %v182 = vadd.f32 0.0, %v181
    %v183 = vpop.f32.mrf.mxu0
    %v184 = vadd.f32 0.0, %v183
    %185 = vdwg.mxu0
    %v186 = vadd.f32 %v47, %v182
    %v187 = vadd.f32 %v48, %v184
    %188 = vst [vmem:[#allocation2] sm:$0xff] %v186
    %189 = vst [vmem:[#allocation2 + $0x8] sm:$0xff] %v187
    // Predicated region
    $region26: #{tpu_custom_call.1} parent=1 // pred_check
      %p190 = pneg %p41
    $region27: #{tpu_custom_call.1} parent=1 // pred_check_branch
      %192 = sbr.rel (%p190) target = $region29
    $region28: #{tpu_custom_call.1} parent=1 // pred_region
      %v193 = vld [vmem:[#allocation2] sm:$0xff]
      %v194 = vld [vmem:[#allocation2 + $0x8] sm:$0xff]
      %v195 = vld [vmem:[%s2] sm:$0x3]
      %v197 = vlaneseq
      %v198 = vshrl.u32 %v197, 7
      %v199 = vsub.s32 0, %v198
      %v200 = vrot.slane %v195, %v199
      %v201 = vlaneseq
      %v202 = vshrl.u32 %v201, 7
      %v203 = vsub.s32 1, %v202
      %v204 = vrot.slane %v195, %v203
      %v207 = vadd.f32 %v193, %v200
      %v208 = vadd.f32 %v194, %v204
      %209 = vst [vmem:[#allocation8] sm:$0xff] %v207
      %210 = vst [vmem:[#allocation8 + $0x8] sm:$0xff] %v208
    $region29: #{tpu_custom_call.1} parent=1 // pred_fallthru
      _
    // Predicated region
    $region30: #{tpu_custom_call.1} parent=1 // pred_check
      _
    $region31: #{tpu_custom_call.1} parent=1 // pred_check_branch
      %212 = sbr.rel (0) target = $region33
    $region32: #{tpu_custom_call.1} parent=1 // pred_region
      %s214 = ssub.s32 256, 256
      %215 = vsyncadd [#allocation5], %s214
      %s217 = sshll.u32 [#allocation8], 4
      %s218 = int_to_ptr.vmem [resolvable:$true] %s217
      %220 = dma.vmem_to_hbm [thread:$0]  %s218, 256, %s3, [#allocation5]
    $region33: #{tpu_custom_call.1} parent=1 // pred_fallthru
      _
    // Predicated region
    $region34: #{tpu_custom_call.1} parent=1 // pred_check
      _
    $region35: #{tpu_custom_call.1} parent=1 // pred_check_branch
      %222 = sbr.rel (0) target = $region37
    $region36: #{tpu_custom_call.1} parent=1 // pred_region
      %223 = dma.done [#allocation5], 256
    $region37: #{tpu_custom_call.1} parent=1 // pred_fallthru
      _
    %224 = vsyncpa [#allocation4], 1
    %225 = vsyncpa [#allocation7], 1
    %226 = vsyncpa [#allocation5], 1

</llo_original>
